<compile_context>
chip_gen: v7x
topology: tpu7x:2x2x1
jax: 0.10.0
libtpu: 0.0.40
codegen_flags: <defaults>
</compile_context>

<pallas_src>
import functools

import jax
import jax.numpy as jnp
from jax.experimental import pallas as pl
from jax.experimental.pallas import tpu as pltpu


def _round_up(x: int, m: int) -> int:
    return (x + m - 1) // m * m


def _mlp_kernel(x_ref, w1_ref, b1_ref, w2_ref, b2_ref, out_ref):
    # x:   (TB, E)    bf16 (or f32) activation tile, pipelined over the batch grid
    # w1:  (E, E)     bf16 [in, out] layout, VMEM-resident across grid steps
    # b1:  (1, E)     f32
    # w2:  (1, E)     f32  second-linear weight row
    # b2:  (1,)       f32  SMEM scalar
    # out: (1, 1, TB) f32  lane-dense rating row for this batch tile
    x = x_ref[...].astype(jnp.bfloat16)          # no-op when the producer emits bf16
    tb = x.shape[0]
    e_out = w1_ref.shape[1]

    # Fused epilogue: walk linear1's output features in 256-lane chunks (matches the
    # v6e/v7x MXU width) so the (TB, E) f32 hidden activation never materializes in
    # VMEM; linear2 (single output feature) stays a VPU multiply + lane reduction
    # instead of an N=1 MXU matmul that would waste >99% of the systolic array.
    cn = 256 if (e_out % 256 == 0 and e_out > 256) else e_out
    acc = jnp.zeros((tb, 1), jnp.float32)
    for c in range(e_out // cn):
        lo = c * cn
        h = jnp.dot(x, w1_ref[:, lo:lo + cn], preferred_element_type=jnp.float32)
        h = jnp.maximum(h + b1_ref[:, lo:lo + cn], 0.0)
        acc = acc + jnp.sum(h * w2_ref[:, lo:lo + cn], axis=-1, keepdims=True)

    r = acc[:, 0] + b2_ref[0]                    # (TB,)
    out_ref[0, 0, :] = jax.nn.sigmoid(r).astype(out_ref.dtype)


def prepare_params(w1, b1, w2, b2):
    """One-time conversion of PyTorch-layout params to the kernel layout.

    w1: (E, E)  linear1.weight (out, in)   -> (E_in, E_out) bf16
    b1: (E,)    linear1.bias               -> (1, E) f32
    w2: (1, E)  linear2.weight (out=1, in) -> (1, E) f32
    b2: (1,)    linear2.bias               -> (1,)  f32 (SMEM scalar)
    """
    E = w1.shape[0]
    w1_io = jnp.asarray(w1).T.astype(jnp.bfloat16)
    b1_row = jnp.asarray(b1).reshape(1, E).astype(jnp.float32)
    w2_row = jnp.asarray(w2).reshape(1, E).astype(jnp.float32)
    b2_s = jnp.asarray(b2).reshape(1).astype(jnp.float32)
    return w1_io, b1_row, w2_row, b2_s


def mlp_forward(hidden, w1_io, b1_row, w2_row, b2_s, *, block_b=1024, target_steps=8):
    """hidden: (B, E) bf16 (preferred) or f32. Returns squeezed f32 rating (B,)."""
    B, E = hidden.shape
    assert block_b % 8 == 0

    # Adaptive batch tile: aim for >= target_steps grid steps (>= 4 per TensorCore on
    # v7x megacore) so the x DMA stays double-buffered, capped at block_b for large B.
    TB = max(8, min(block_b, _round_up(pl.cdiv(B, target_steps), 8)))
    num_tiles = pl.cdiv(B, TB)   # ragged last tile handled by Pallas (no wrapper pad)

    cost = pl.CostEstimate(
        flops=2 * B * E * E + 3 * B * E,
        transcendentals=B,
        bytes_accessed=(B * E * hidden.dtype.itemsize          # x stream
                        + E * E * w1_io.dtype.itemsize         # resident w1 (bf16)
                        + 2 * E * 4                            # b1, w2 rows
                        + num_tiles * TB * 4),                 # rating output
    )

    out = pl.pallas_call(
        _mlp_kernel,
        out_shape=jax.ShapeDtypeStruct((num_tiles, 1, TB), jnp.float32),
        grid=(num_tiles,),
        in_specs=[
            pl.BlockSpec((TB, E), lambda i: (i, 0)),            # x: tiled over batch
            pl.BlockSpec((E, E), lambda i: (0, 0)),             # w1: VMEM-resident
            pl.BlockSpec((1, E), lambda i: (0, 0)),             # b1: VMEM-resident
            pl.BlockSpec((1, E), lambda i: (0, 0)),             # w2 row: VMEM-resident
            pl.BlockSpec(memory_space=pltpu.MemorySpace.SMEM),  # b2 scalar
        ],
        out_specs=pl.BlockSpec((1, 1, TB), lambda i: (i, 0, 0)),
        compiler_params=pltpu.CompilerParams(
            dimension_semantics=("parallel",),                  # v7x megacore only
        ),
        cost_estimate=cost,
    )(hidden, w1_io, b1_row, w2_row, b2_s)

    # Lane-dense output -> flatten and drop the garbage rows of the ragged last tile.
    rating = out.reshape(num_tiles * TB)[:B]
    # torch.squeeze semantics: (B,) for B > 1, 0-d scalar for B == 1.
    return jnp.squeeze(rating)


def init_params(key, emsize):
    """Deterministic init matching MLP.init_weights: weights ~ U(-0.1, 0.1), biases zero."""
    initrange = 0.1
    k1, k2 = jax.random.split(key)
    w1 = jax.random.uniform(k1, (emsize, emsize), jnp.float32, -initrange, initrange)
    b1 = jnp.zeros((emsize,), jnp.float32)
    w2 = jax.random.uniform(k2, (1, emsize), jnp.float32, -initrange, initrange)
    b2 = jnp.zeros((1,), jnp.float32)
    return w1, b1, w2, b2


if __name__ == "__main__":
    key = jax.random.PRNGKey(0)
    emsize = 512     # PETER's usual emsize; multiple of 128 -> full lane / MXU width
    batch = 100      # not a multiple of the tile -> exercises the pad-free edge block

    kx, kp = jax.random.split(key)
    # Upstream producer emits bf16 activations (halves the dominant x DMA stream).
    hidden = jax.random.normal(kx, (batch, emsize), jnp.float32).astype(jnp.bfloat16)
    w1, b1, w2, b2 = init_params(kp, emsize)
    params = prepare_params(w1, b1, w2, b2)   # layout prep hoisted out of the forward

    fwd = jax.jit(functools.partial(mlp_forward, block_b=1024))
    rating = fwd(hidden, *params)
    jax.block_until_ready(rating)

    # Reference in plain JAX using the identical bf16-input / f32-accumulation recipe.
    w1_io, b1_row, w2_row, b2_s = params
    h_ref = jnp.maximum(
        jnp.dot(hidden, w1_io, preferred_element_type=jnp.float32) + b1_row, 0.0)
    r_ref = jnp.squeeze(jax.nn.sigmoid(jnp.sum(h_ref * w2_row, axis=-1) + b2_s[0]))

    assert rating.shape == (batch,)
    assert rating.dtype == jnp.float32
    assert jnp.allclose(rating, r_ref, atol=1e-3, rtol=1e-3), \
        float(jnp.max(jnp.abs(rating - r_ref)))

    print("KERNEL_OK")
</pallas_src>

<mosaic_0001>
module attributes {stable_mosaic.version = 11 : i64} {
  func.func @_mlp_kernel(%arg0: i32, %arg1: memref<16x512xbf16, #tpu.memory_space<vmem>>, %arg2: memref<512x512xbf16, #tpu.memory_space<vmem>>, %arg3: memref<1x512xf32, #tpu.memory_space<vmem>>, %arg4: memref<1x512xf32, #tpu.memory_space<vmem>>, %arg5: memref<1xf32, #tpu.memory_space<smem>>, %arg6: memref<1x1x16xf32, #tpu.memory_space<vmem>>) attributes {dimension_semantics = [#tpu.dimension_semantics<parallel>], iteration_bounds = array<i64: 7>, scalar_prefetch = 0 : i64, scratch_operands = 0 : i64, tpu.core_type = #tpu.core_type<tc>, window_params = [{transform_indices = @transform_0, window_bounds = array<i64: 16, 512>}, {pipeline_mode = #tpu.pipeline_mode<synchronous>, transform_indices = @transform_1, window_bounds = array<i64: 512, 512>}, {pipeline_mode = #tpu.pipeline_mode<synchronous>, transform_indices = @transform_2, window_bounds = array<i64: 1, 512>}, {pipeline_mode = #tpu.pipeline_mode<synchronous>, transform_indices = @transform_3, window_bounds = array<i64: 1, 512>}, {transform_indices = @transform_4, window_bounds = array<i64: 1>}, {transform_indices = @transform_5, window_bounds = array<i64: 1, 1, 16>}]} {
    %c0 = arith.constant 0 : index
    %c0_0 = arith.constant 0 : index
    %0 = vector.load %arg1[%c0, %c0_0] : memref<16x512xbf16, #tpu.memory_space<vmem>>, vector<16x512xbf16>
    %cst = arith.constant 0.000000e+00 : f32
    %1 = vector.broadcast %cst : f32 to vector<16x1xf32>
    %c0_1 = arith.constant 0 : index
    %c0_2 = arith.constant 0 : index
    %2 = vector.load %arg2[%c0_1, %c0_2] : memref<512x512xbf16, #tpu.memory_space<vmem>>, vector<512x256xbf16>
    %cst_3 = arith.constant dense<0.000000e+00> : vector<16x256xf32>
    %3 = tpu.matmul %0, %2, %cst_3 {dimension_numbers = #tpu.dot_dimension_numbers<[1], [0], [0], [1], [0, 0, 1, 1], [], []>} : vector<16x512xbf16>, vector<512x256xbf16>, vector<16x256xf32> -> vector<16x256xf32>
    %c0_4 = arith.constant 0 : index
    %c0_5 = arith.constant 0 : index
    %4 = vector.load %arg3[%c0_4, %c0_5] : memref<1x512xf32, #tpu.memory_space<vmem>>, vector<1x256xf32>
    %5 = vector.broadcast %4 : vector<1x256xf32> to vector<16x256xf32>
    %6 = arith.addf %3, %5 : vector<16x256xf32>
    %cst_6 = arith.constant 0.000000e+00 : f32
    %7 = vector.broadcast %cst_6 : f32 to vector<16x256xf32>
    %8 = arith.maximumf %6, %7 : vector<16x256xf32>
    %c0_7 = arith.constant 0 : index
    %c0_8 = arith.constant 0 : index
    %9 = vector.load %arg4[%c0_7, %c0_8] : memref<1x512xf32, #tpu.memory_space<vmem>>, vector<1x256xf32>
    %10 = vector.broadcast %9 : vector<1x256xf32> to vector<16x256xf32>
    %11 = arith.mulf %8, %10 : vector<16x256xf32>
    %cst_9 = arith.constant dense<0.000000e+00> : vector<16xf32>
    %12 = vector.multi_reduction <add>, %11, %cst_9 [1] : vector<16x256xf32> to vector<16xf32>
    %13 = vector.shape_cast %12 : vector<16xf32> to vector<16x1xf32>
    %14 = arith.addf %1, %13 : vector<16x1xf32>
    %c0_10 = arith.constant 0 : index
    %c256 = arith.constant 256 : index
    %15 = vector.load %arg2[%c0_10, %c256] : memref<512x512xbf16, #tpu.memory_space<vmem>>, vector<512x256xbf16>
    %cst_11 = arith.constant dense<0.000000e+00> : vector<16x256xf32>
    %16 = tpu.matmul %0, %15, %cst_11 {dimension_numbers = #tpu.dot_dimension_numbers<[1], [0], [0], [1], [0, 0, 1, 1], [], []>} : vector<16x512xbf16>, vector<512x256xbf16>, vector<16x256xf32> -> vector<16x256xf32>
    %c0_12 = arith.constant 0 : index
    %c256_13 = arith.constant 256 : index
    %17 = vector.load %arg3[%c0_12, %c256_13] : memref<1x512xf32, #tpu.memory_space<vmem>>, vector<1x256xf32>
    %18 = vector.broadcast %17 : vector<1x256xf32> to vector<16x256xf32>
    %19 = arith.addf %16, %18 : vector<16x256xf32>
    %cst_14 = arith.constant 0.000000e+00 : f32
    %20 = vector.broadcast %cst_14 : f32 to vector<16x256xf32>
    %21 = arith.maximumf %19, %20 : vector<16x256xf32>
    %c0_15 = arith.constant 0 : index
    %c256_16 = arith.constant 256 : index
    %22 = vector.load %arg4[%c0_15, %c256_16] : memref<1x512xf32, #tpu.memory_space<vmem>>, vector<1x256xf32>
    %23 = vector.broadcast %22 : vector<1x256xf32> to vector<16x256xf32>
    %24 = arith.mulf %21, %23 : vector<16x256xf32>
    %cst_17 = arith.constant dense<0.000000e+00> : vector<16xf32>
    %25 = vector.multi_reduction <add>, %24, %cst_17 [1] : vector<16x256xf32> to vector<16xf32>
    %26 = vector.shape_cast %25 : vector<16xf32> to vector<16x1xf32>
    %27 = arith.addf %14, %26 : vector<16x1xf32>
    %28 = vector.shape_cast %27 : vector<16x1xf32> to vector<16xf32>
    %c0_18 = arith.constant 0 : index
    %29 = memref.load %arg5[%c0_18] : memref<1xf32, #tpu.memory_space<smem>>
    %30 = vector.broadcast %29 : f32 to vector<16xf32>
    %31 = arith.addf %28, %30 : vector<16xf32>
    %32 = arith.negf %31 : vector<16xf32>
    %33 = math.exp %32 : vector<16xf32>
    %cst_19 = arith.constant 1.000000e+00 : f32
    %34 = vector.broadcast %cst_19 : f32 to vector<16xf32>
    %35 = arith.addf %34, %33 : vector<16xf32>
    %36 = arith.divf %34, %35 : vector<16xf32>
    %c0_20 = arith.constant 0 : index
    %c0_21 = arith.constant 0 : index
    %c0_22 = arith.constant 0 : index
    %37 = vector.load %arg6[%c0_20, %c0_21, %c0_22] : memref<1x1x16xf32, #tpu.memory_space<vmem>>, vector<1x1x16xf32>
    %38 = vector.shape_cast %37 : vector<1x1x16xf32> to vector<16xf32>
    %39 = vector.shape_cast %36 : vector<16xf32> to vector<1x1x16xf32>
    tpu.vector_store %arg6[%c0_20, %c0_21, %c0_22], %39 {strides = array<i32>} : memref<1x1x16xf32, #tpu.memory_space<vmem>>, vector<1x1x16xf32>,
    return
  }
  func.func @transform_0(%arg0: i32) -> (i32, i32) {
    %c0_i32 = arith.constant 0 : i32
    %c0_i32_0 = arith.constant 0 : i32
    return %arg0, %c0_i32 : i32, i32
  }
  func.func @transform_1(%arg0: i32) -> (i32, i32) {
    %c0_i32 = arith.constant 0 : i32
    %c0_i32_0 = arith.constant 0 : i32
    %c0_i32_1 = arith.constant 0 : i32
    return %c0_i32, %c0_i32_0 : i32, i32
  }
  func.func @transform_2(%arg0: i32) -> (i32, i32) {
    %c0_i32 = arith.constant 0 : i32
    %c0_i32_0 = arith.constant 0 : i32
    %c0_i32_1 = arith.constant 0 : i32
    return %c0_i32, %c0_i32_0 : i32, i32
  }
  func.func @transform_3(%arg0: i32) -> (i32, i32) {
    %c0_i32 = arith.constant 0 : i32
    %c0_i32_0 = arith.constant 0 : i32
    %c0_i32_1 = arith.constant 0 : i32
    return %c0_i32, %c0_i32_0 : i32, i32
  }
  func.func @transform_4(%arg0: i32) -> i32 {
    %c0_i32 = arith.constant 0 : i32
    %c0_i32_0 = arith.constant 0 : i32
    return %c0_i32 : i32
  }
  func.func @transform_5(%arg0: i32) -> (i32, i32, i32) {
    %c0_i32 = arith.constant 0 : i32
    %c0_i32_0 = arith.constant 0 : i32
    %c0_i32_1 = arith.constant 0 : i32
    return %arg0, %c0_i32, %c0_i32_0 : i32, i32, i32
  }
}

</mosaic_0001>

<llo_original>
// kernel: mlp_forward.1
$region0: #{mlp_forward.1}
  #allocation0 [shape = 'u32[]', space=smem, size = 0x4, offset = 0x4, fixed_abs, tag = 'smem constant byte address 0x4 - core index']
  #allocation1 [shape = 'u32[144,128]{1,0:T(1,128)}', space=vmem, size = 0x12000, scoped, tag = 'internal scratch']
  #allocation2 [shape = 'f32[1]{0:T(128)S(6)}', space=smem, size = 0x200, scoped, tag = 'scoped memory for mlp_forward.1']
  %s0 = inlined_call_operand.hbm [shape: bf16[100,512], index: 0, kind: input, shape index: {}]
  %s1 = inlined_call_operand.hbm [shape: bf16[512,512], index: 1, kind: input, shape index: {}]
  %s2 = inlined_call_operand.vmem [shape: f32[1,512], index: 2, kind: input, shape index: {}]
  %s3 = inlined_call_operand.vmem [shape: f32[1,512], index: 3, kind: input, shape index: {}]
  %s4 = inlined_call_operand.<no memory space> [shape: f32[1], index: 4, kind: input, shape index: {}]
  %s5 = inlined_call_operand.vmem [shape: f32[7,1,16], index: 5, kind: output, shape index: {}]
  %s6 = sld [smem:[#allocation0]]
  $region61: #{mlp_forward.1} parent=0
    _
  %s8 = ssub.s32 1, %s6
  %s9 = scalar_select 0, %s8, %s6
  %10 = sst [smem:[#allocation2]] %s4
  $region1: #{mlp_forward.1} parent=0
    #allocation3 [shape = 'u8[32768]{0}', space=vmem, size = 0x8000, scoped, tag = 'input window, operand 0']
    #allocation4 [shape = 's32[2]{0}', space=sflag, size = 0x8, scoped, tag = 'scoped memory for mlp_forward.1']
    #allocation5 [shape = 'u8[524288]{0}', space=vmem, size = 0x80000, scoped, tag = 'input window, operand 1, single buffered']
    #allocation6 [shape = 's32[1]{0}', space=sflag, size = 0x4, scoped, tag = 'scoped memory for mlp_forward.1']
    %11 = vsyncpa [#allocation4], 0
    %s12 = scalar_lea.sflag [#allocation4], 1
    %13 = vsyncpa %s12, 0
    %14 = vsyncpa [#allocation6], 0
    loop: start=0, step=1, limit=9
    $region2: #{mlp_forward.1} parent=1 // loop_pre_header
      _
    $region3: #{mlp_forward.1} parent=1 // loop_header
      %s16 = sphi 0, %s20
      %p17 = scmp.ge.s32.totalorder %s16, 9
      %s26 = sphi 0, %s28
      %s29 = sphi 0, %s26
      %s30 = sphi 0, %s29
      %s46 = sphi 0, %s30
      %s50 = sphi 0, %s50
      %s52 = sphi 0, %s50
      %s53 = sphi 0, %s52
      %s67 = sphi 0, %s53
      %s71 = sphi 0, %s71
      %s73 = sphi 0, %s71
      %s74 = sphi 0, %s73
      %s88 = sphi 0, %s74
      %s92 = sphi 0, %s92
      %s94 = sphi 0, %s92
      %s95 = sphi 0, %s94
      %s109 = sphi 0, %s95
      %s113 = sphi 0, %s113
      %s115 = sphi 0, %s113
      %s116 = sphi 0, %s115
      %s130 = sphi 0, %s116
      %s136 = sphi 0, %s138
      %s139 = sphi 0, %s136
      %s140 = sphi 0, %s139
      %s156 = sphi 0, %s140
    $region4: #{mlp_forward.1} parent=1 // loop_header_branch
      %19 = sbr.rel (%p17) target = $region8
    $region5: #{mlp_forward.1} parent=1 // loop_body
      %s21 = ssub.s32 %s16, 1
      %s22 = ssub.s32 %s16, 2
      %s23 = sadd.s32 %s16, 1
      %s24 = ssub.s32 %s16, %s23
      %p25 = scmp.eq.s32.totalorder %s24, 0
      %s27 = sadd.s32 %s26, 1
      %s28 = scalar_select %p25, %s26, %s27
      %p31 = pneg %p25
      %p32 = scmp.eq.s32.totalorder %s16, 6
      %p33 = por %p31, %p32
      %p34 = scmp.ne.s32.totalorder %s26, %s29
      %p35 = scmp.eq.s32.totalorder %s16, 0
      %p36 = por %p34, %p35
      %p37 = scmp.ne.s32.totalorder %s26, %s29
      %p38 = scmp.eq.s32.totalorder %s21, 6
      %p39 = por %p37, %p38
      %p40 = scmp.ne.s32.totalorder %s29, %s30
      %p41 = scmp.eq.s32.totalorder %s21, 0
      %p42 = por %p40, %p41
      %p43 = scmp.ne.s32.totalorder %s29, %s30
      %p44 = scmp.eq.s32.totalorder %s22, 6
      %p45 = por %p43, %p44
      %p47 = scmp.ne.s32.totalorder %s30, %s46
      %p48 = scmp.eq.s32.totalorder %s22, 0
      %p49 = por %p47, %p48
      %s51 = sadd.s32 %s50, 1
      %p54 = scmp.eq.s32.totalorder %s16, 6
      %p55 = scmp.ne.s32.totalorder %s50, %s52
      %p56 = scmp.eq.s32.totalorder %s16, 0
      %p57 = por %p55, %p56
      %p58 = scmp.ne.s32.totalorder %s50, %s52
      %p59 = scmp.eq.s32.totalorder %s21, 6
      %p60 = por %p58, %p59
      %p61 = scmp.ne.s32.totalorder %s52, %s53
      %p62 = scmp.eq.s32.totalorder %s21, 0
      %p63 = por %p61, %p62
      %p64 = scmp.ne.s32.totalorder %s52, %s53
      %p65 = scmp.eq.s32.totalorder %s22, 6
      %p66 = por %p64, %p65
      %p68 = scmp.ne.s32.totalorder %s53, %s67
      %p69 = scmp.eq.s32.totalorder %s22, 0
      %p70 = por %p68, %p69
      %s72 = sadd.s32 %s71, 1
      %p75 = scmp.eq.s32.totalorder %s16, 6
      %p76 = scmp.ne.s32.totalorder %s71, %s73
      %p77 = scmp.eq.s32.totalorder %s16, 0
      %p78 = por %p76, %p77
      %p79 = scmp.ne.s32.totalorder %s71, %s73
      %p80 = scmp.eq.s32.totalorder %s21, 6
      %p81 = por %p79, %p80
      %p82 = scmp.ne.s32.totalorder %s73, %s74
      %p83 = scmp.eq.s32.totalorder %s21, 0
      %p84 = por %p82, %p83
      %p85 = scmp.ne.s32.totalorder %s73, %s74
      %p86 = scmp.eq.s32.totalorder %s22, 6
      %p87 = por %p85, %p86
      %p89 = scmp.ne.s32.totalorder %s74, %s88
      %p90 = scmp.eq.s32.totalorder %s22, 0
      %p91 = por %p89, %p90
      %s93 = sadd.s32 %s92, 1
      %p96 = scmp.eq.s32.totalorder %s16, 6
      %p97 = scmp.ne.s32.totalorder %s92, %s94
      %p98 = scmp.eq.s32.totalorder %s16, 0
      %p99 = por %p97, %p98
      %p100 = scmp.ne.s32.totalorder %s92, %s94
      %p101 = scmp.eq.s32.totalorder %s21, 6
      %p102 = por %p100, %p101
      %p103 = scmp.ne.s32.totalorder %s94, %s95
      %p104 = scmp.eq.s32.totalorder %s21, 0
      %p105 = por %p103, %p104
      %p106 = scmp.ne.s32.totalorder %s94, %s95
      %p107 = scmp.eq.s32.totalorder %s22, 6
      %p108 = por %p106, %p107
      %p110 = scmp.ne.s32.totalorder %s95, %s109
      %p111 = scmp.eq.s32.totalorder %s22, 0
      %p112 = por %p110, %p111
      %s114 = sadd.s32 %s113, 1
      %p117 = scmp.eq.s32.totalorder %s16, 6
      %p118 = scmp.ne.s32.totalorder %s113, %s115
      %p119 = scmp.eq.s32.totalorder %s16, 0
      %p120 = por %p118, %p119
      %p121 = scmp.ne.s32.totalorder %s113, %s115
      %p122 = scmp.eq.s32.totalorder %s21, 6
      %p123 = por %p121, %p122
      %p124 = scmp.ne.s32.totalorder %s115, %s116
      %p125 = scmp.eq.s32.totalorder %s21, 0
      %p126 = por %p124, %p125
      %p127 = scmp.ne.s32.totalorder %s115, %s116
      %p128 = scmp.eq.s32.totalorder %s22, 6
      %p129 = por %p127, %p128
      %p131 = scmp.ne.s32.totalorder %s116, %s130
      %p132 = scmp.eq.s32.totalorder %s22, 0
      %p133 = por %p131, %p132
      %s134 = ssub.s32 %s16, %s23
      %p135 = scmp.eq.s32.totalorder %s134, 0
      %s137 = sadd.s32 %s136, 1
      %s138 = scalar_select %p135, %s136, %s137
      %p141 = pneg %p135
      %p142 = scmp.eq.s32.totalorder %s16, 6
      %p143 = por %p141, %p142
      %p144 = scmp.ne.s32.totalorder %s136, %s139
      %p145 = scmp.eq.s32.totalorder %s16, 0
      %p146 = por %p144, %p145
      %p147 = scmp.ne.s32.totalorder %s136, %s139
      %p148 = scmp.eq.s32.totalorder %s21, 6
      %p149 = por %p147, %p148
      %p150 = scmp.ne.s32.totalorder %s139, %s140
      %p151 = scmp.eq.s32.totalorder %s21, 0
      %p152 = por %p150, %p151
      %p153 = scmp.ne.s32.totalorder %s139, %s140
      %p154 = scmp.eq.s32.totalorder %s22, 6
      %p155 = por %p153, %p154
      %p157 = scmp.ne.s32.totalorder %s140, %s156
      %p158 = scmp.eq.s32.totalorder %s22, 0
      %p159 = por %p157, %p158
      %p160 = scmp.le.s32.totalorder 1, %s16
      %p161 = scmp.lt.s32.totalorder %s16, 8
      %p162 = pnand %p160, %p161
      %p163 = pneg %p162
      // Predicated region
      $region9: #{mlp_forward.1} parent=5 // pred_check
        _
      $region10: #{mlp_forward.1} parent=5 // pred_check_branch
        %165 = sbr.rel (%p162) target = $region12
      $region11: #{mlp_forward.1} parent=5 // pred_region
        %s166 = ssub.s32 %s16, 1
        // Predicated region
        $region13: #{mlp_forward.1} parent=11 // pred_check
          %p167 = pneg %p63
        $region14: #{mlp_forward.1} parent=11 // pred_check_branch
          %169 = sbr.rel (%p167) target = $region16
        $region15: #{mlp_forward.1} parent=11 // pred_region
          %s171 = ssub.s32 16384, 16384
          %172 = vsyncadd [#allocation6], %s171
          %s173 = sshll.u32 [#allocation5], 4
          %s174 = int_to_ptr.vmem [resolvable:$true] %s173
          %179 = dma.hbm_to_vmem [thread:$0]  %s1, 16384, %s174, [#allocation6], 256, 256, 16
        $region16: #{mlp_forward.1} parent=11 // pred_fallthru
          _
        // Predicated region
        $region17: #{mlp_forward.1} parent=11 // pred_check
          %p180 = pneg %p84
        $region18: #{mlp_forward.1} parent=11 // pred_check_branch
          %182 = sbr.rel (%p180) target = $region20
        $region19: #{mlp_forward.1} parent=11 // pred_region
          _
        $region20: #{mlp_forward.1} parent=11 // pred_fallthru
          _
        // Predicated region
        $region21: #{mlp_forward.1} parent=11 // pred_check
          %p183 = pneg %p105
        $region22: #{mlp_forward.1} parent=11 // pred_check_branch
          %185 = sbr.rel (%p183) target = $region24
        $region23: #{mlp_forward.1} parent=11 // pred_region
          _
        $region24: #{mlp_forward.1} parent=11 // pred_fallthru
          _
        // Predicated region
        $region25: #{mlp_forward.1} parent=11 // pred_check
          %p186 = pneg %p126
        $region26: #{mlp_forward.1} parent=11 // pred_check_branch
          %188 = sbr.rel (%p186) target = $region28
        $region27: #{mlp_forward.1} parent=11 // pred_region
          _
        $region28: #{mlp_forward.1} parent=11 // pred_fallthru
          _
      $region12: #{mlp_forward.1} parent=5 // pred_fallthru
        _
      %p189 = scmp.lt.s32.totalorder %s16, 7
      // Predicated region
      $region29: #{mlp_forward.1} parent=5 // pred_check
        %p190 = pneg %p189
      $region30: #{mlp_forward.1} parent=5 // pred_check_branch
        %192 = sbr.rel (%p190) target = $region32
      $region31: #{mlp_forward.1} parent=5 // pred_region
        // Predicated region
        $region33: #{mlp_forward.1} parent=31 // pred_check
          %p193 = pneg %p36
        $region34: #{mlp_forward.1} parent=31 // pred_check_branch
          %195 = sbr.rel (%p193) target = $region36
        $region35: #{mlp_forward.1} parent=31 // pred_region
          %s196 = sand.u32 %s26, 1
          %s197 = scalar_lea.sflag [#allocation4], %s196
          %s198 = sand.u32 %s26, 1
          %s199 = smul.addr %s198, 32
          %s200 = scalar_lea.vmem [#allocation3], %s199
          %s201 = smul.u32 2, %s16
          %s202 = ssub.s32 13, %s201
          %p203 = scmp.lt.s32.totalorder %s202, 2
          %s204 = scalar_select %p203, %s202, 2
          %s205 = smul.u32 64, %s204
          %s206 = smul.u32 %s205, 4
          %s208 = ssub.s32 512, %s206
          %209 = vsyncadd %s197, %s208
          %p210 = scmp.ne.s32.totalorder 0, %s206
          %s211 = smul.addr %s201, 4
          %s212 = smul.addr %s211, 64
          %s213 = scalar_lea.hbm %s0, %s212
          %s214 = smul.u32 16, %s204
          %s215 = sshll.u32 %s200, 4
          %s216 = int_to_ptr.vmem [resolvable:$true] %s215
          %s217 = sshll.u32 %s214, 4
          %221 = dma.hbm_to_vmem [thread:$0]  (%p210), %s213, %s217, %s216, %s197, 256, 256, 16
        $region36: #{mlp_forward.1} parent=31 // pred_fallthru
          _
      $region32: #{mlp_forward.1} parent=5 // pred_fallthru
        _
      %p222 = scmp.le.s32.totalorder 1, %s16
      %p223 = scmp.lt.s32.totalorder %s16, 8
      %p224 = pnand %p222, %p223
      %p225 = pneg %p224
      // Predicated region
      $region37: #{mlp_forward.1} parent=5 // pred_check
        _
      $region38: #{mlp_forward.1} parent=5 // pred_check_branch
        %227 = sbr.rel (%p224) target = $region40
      $region39: #{mlp_forward.1} parent=5 // pred_region
        %s228 = ssub.s32 %s16, 1
        %s229 = sand.u32 %s29, 1
        %s230 = scalar_lea.sflag [#allocation4], %s229
        %s231 = sand.u32 %s29, 1
        %s232 = smul.addr %s231, 32
        %s233 = scalar_lea.vmem [#allocation3], %s232
        // Predicated region
        $region41: #{mlp_forward.1} parent=39 // pred_check
          %p234 = pneg %p42
        $region42: #{mlp_forward.1} parent=39 // pred_check_branch
          %236 = sbr.rel (%p234) target = $region44
        $region43: #{mlp_forward.1} parent=39 // pred_region
          %237 = dma.done %s230, 512
        $region44: #{mlp_forward.1} parent=39 // pred_fallthru
          _
        // Predicated region
        $region45: #{mlp_forward.1} parent=39 // pred_check
          %p238 = pneg %p63
        $region46: #{mlp_forward.1} parent=39 // pred_check_branch
          %240 = sbr.rel (%p238) target = $region48
        $region47: #{mlp_forward.1} parent=39 // pred_region
          %241 = dma.done [#allocation6], 16384
        $region48: #{mlp_forward.1} parent=39 // pred_fallthru
          _
        %s242 = sand.u32 %s29, 1
        %s243 = scalar_lea.sflag [#allocation4], %s242
        %s244 = sand.u32 %s29, 1
        %s245 = smul.addr %s244, 32
        %s246 = scalar_lea.vmem [#allocation3], %s245
        %p247 = pneg %p42
        %p248 = pneg %p39
        %p249 = pneg %p63
        %p250 = pneg %p60
        %p251 = pneg %p84
        %p252 = pneg %p81
        %p253 = pneg %p105
        %p254 = pneg %p102
        %p255 = pneg %p126
        %p256 = pneg %p123
        %p257 = pneg %p152
        %p258 = pneg %p149
        %p259 = scmp.lt.s32.totalorder %s21, 6
        %s260 = scalar_select %p259, %s21, 6
        %s261 = scalar_lea.vmem %s5, %s260
        %s262 = smul.u32 2, %s21
        %s263 = ssub.s32 13, %s262
        %p264 = scmp.lt.s32.totalorder %s263, 2
        %s265 = scalar_select %p264, %s263, 2
        %s266 = smul.u32 64, %s265
        %s267 = smul.u32 %s266, 4
        %p268 = scmp.lt.s32.totalorder %s21, 6
        %s269 = scalar_select %p268, %s21, 6
        %s270 = scalar_lea.vmem %s5, %s269
        %v271 = vld [vmem:[%s233] sm:$0xff]
        %v272 = vld [vmem:[%s233 + $0x8] sm:$0xff]
        %v273 = vld [vmem:[%s233 + $0x10] sm:$0xff]
        %v274 = vld [vmem:[%s233 + $0x18] sm:$0xff]
        %v275 = vld [vmem:[#allocation5] sm:$0xff]
        %v276 = vld [vmem:[#allocation5 + $0x10] sm:$0xff]
        %v277 = vld [vmem:[#allocation5 + $0x20] sm:$0xff]
        %v278 = vld [vmem:[#allocation5 + $0x30] sm:$0xff]
        %v279 = vld [vmem:[#allocation5 + $0x40] sm:$0xff]
        %v280 = vld [vmem:[#allocation5 + $0x50] sm:$0xff]
        %v281 = vld [vmem:[#allocation5 + $0x60] sm:$0xff]
        %v282 = vld [vmem:[#allocation5 + $0x70] sm:$0xff]
        %v283 = vld [vmem:[#allocation5 + $0x80] sm:$0xff]
        %v284 = vld [vmem:[#allocation5 + $0x90] sm:$0xff]
        %v285 = vld [vmem:[#allocation5 + $0xa0] sm:$0xff]
        %v286 = vld [vmem:[#allocation5 + $0xb0] sm:$0xff]
        %v287 = vld [vmem:[#allocation5 + $0xc0] sm:$0xff]
        %v288 = vld [vmem:[#allocation5 + $0xd0] sm:$0xff]
        %v289 = vld [vmem:[#allocation5 + $0xe0] sm:$0xff]
        %v290 = vld [vmem:[#allocation5 + $0xf0] sm:$0xff]
        %v291 = vld [vmem:[#allocation5 + $0x100] sm:$0xff]
        %v292 = vld [vmem:[#allocation5 + $0x110] sm:$0xff]
        %v293 = vld [vmem:[#allocation5 + $0x120] sm:$0xff]
        %v294 = vld [vmem:[#allocation5 + $0x130] sm:$0xff]
        %v295 = vld [vmem:[#allocation5 + $0x140] sm:$0xff]
        %v296 = vld [vmem:[#allocation5 + $0x150] sm:$0xff]
        %v297 = vld [vmem:[#allocation5 + $0x160] sm:$0xff]
        %v298 = vld [vmem:[#allocation5 + $0x170] sm:$0xff]
        %v299 = vld [vmem:[#allocation5 + $0x180] sm:$0xff]
        %v300 = vld [vmem:[#allocation5 + $0x190] sm:$0xff]
        %v301 = vld [vmem:[#allocation5 + $0x1a0] sm:$0xff]
        %v302 = vld [vmem:[#allocation5 + $0x1b0] sm:$0xff]
        %v303 = vld [vmem:[#allocation5 + $0x1c0] sm:$0xff]
        %v304 = vld [vmem:[#allocation5 + $0x1d0] sm:$0xff]
        %v305 = vld [vmem:[#allocation5 + $0x1e0] sm:$0xff]
        %v306 = vld [vmem:[#allocation5 + $0x1f0] sm:$0xff]
        %v307 = vld [vmem:[#allocation5 + $0x200] sm:$0xff]
        %v308 = vld [vmem:[#allocation5 + $0x210] sm:$0xff]
        %v309 = vld [vmem:[#allocation5 + $0x220] sm:$0xff]
        %v310 = vld [vmem:[#allocation5 + $0x230] sm:$0xff]
        %v311 = vld [vmem:[#allocation5 + $0x240] sm:$0xff]
        %v312 = vld [vmem:[#allocation5 + $0x250] sm:$0xff]
        %v313 = vld [vmem:[#allocation5 + $0x260] sm:$0xff]
        %v314 = vld [vmem:[#allocation5 + $0x270] sm:$0xff]
        %v315 = vld [vmem:[#allocation5 + $0x280] sm:$0xff]
        %v316 = vld [vmem:[#allocation5 + $0x290] sm:$0xff]
        %v317 = vld [vmem:[#allocation5 + $0x2a0] sm:$0xff]
        %v318 = vld [vmem:[#allocation5 + $0x2b0] sm:$0xff]
        %v319 = vld [vmem:[#allocation5 + $0x2c0] sm:$0xff]
        %v320 = vld [vmem:[#allocation5 + $0x2d0] sm:$0xff]
        %v321 = vld [vmem:[#allocation5 + $0x2e0] sm:$0xff]
        %v322 = vld [vmem:[#allocation5 + $0x2f0] sm:$0xff]
        %v323 = vld [vmem:[#allocation5 + $0x300] sm:$0xff]
        %v324 = vld [vmem:[#allocation5 + $0x310] sm:$0xff]
        %v325 = vld [vmem:[#allocation5 + $0x320] sm:$0xff]
        %v326 = vld [vmem:[#allocation5 + $0x330] sm:$0xff]
        %v327 = vld [vmem:[#allocation5 + $0x340] sm:$0xff]
        %v328 = vld [vmem:[#allocation5 + $0x350] sm:$0xff]
        %v329 = vld [vmem:[#allocation5 + $0x360] sm:$0xff]
        %v330 = vld [vmem:[#allocation5 + $0x370] sm:$0xff]
        %v331 = vld [vmem:[#allocation5 + $0x380] sm:$0xff]
        %v332 = vld [vmem:[#allocation5 + $0x390] sm:$0xff]
        %v333 = vld [vmem:[#allocation5 + $0x3a0] sm:$0xff]
        %v334 = vld [vmem:[#allocation5 + $0x3b0] sm:$0xff]
        %v335 = vld [vmem:[#allocation5 + $0x3c0] sm:$0xff]
        %v336 = vld [vmem:[#allocation5 + $0x3d0] sm:$0xff]
        %v337 = vld [vmem:[#allocation5 + $0x3e0] sm:$0xff]
        %v338 = vld [vmem:[#allocation5 + $0x3f0] sm:$0xff]
        %v339 = vld [vmem:[%s2] sm:$0x3]
        %v341 = vlaneseq
        %v342 = vshrl.u32 %v341, 7
        %v343 = vsub.s32 0, %v342
        %v344 = vrot.slane %v339, %v343
        %v345 = vlaneseq
        %v346 = vshrl.u32 %v345, 7
        %v347 = vsub.s32 1, %v346
        %v348 = vrot.slane %v339, %v347
        %v355 = vunpack.c.l.b16 %v271
        %v356 = vunpack.c.h.b16 %v271
        %v357 = vunpack.c.l.b16 %v272
        %v358 = vunpack.c.h.b16 %v272
        %v359 = vunpack.c.l.b16 %v273
        %v360 = vunpack.c.h.b16 %v273
        %v361 = vunpack.c.l.b16 %v274
        %v362 = vunpack.c.h.b16 %v274
        %v363 = vpack.c.b16 %v359, %v355
        %v364 = vpack.c.b16 %v360, %v356
        %v365 = vpack.c.b16 %v361, %v357
        %v366 = vpack.c.b16 %v362, %v358
        %v435 = vunpack.c.l.b16 %v275
        %v436 = vunpack.c.h.b16 %v275
        %v437 = vunpack.c.l.b16 %v276
        %v438 = vunpack.c.h.b16 %v276
        %v439 = vunpack.c.l.b16 %v277
        %v440 = vunpack.c.h.b16 %v277
        %v441 = vunpack.c.l.b16 %v278
        %v442 = vunpack.c.h.b16 %v278
        %v443 = vunpack.c.l.b16 %v279
        %v444 = vunpack.c.h.b16 %v279
        %v445 = vunpack.c.l.b16 %v280
        %v446 = vunpack.c.h.b16 %v280
        %v447 = vunpack.c.l.b16 %v281
        %v448 = vunpack.c.h.b16 %v281
        %v449 = vunpack.c.l.b16 %v282
        %v450 = vunpack.c.h.b16 %v282
        %v451 = vunpack.c.l.b16 %v283
        %v452 = vunpack.c.h.b16 %v283
        %v453 = vunpack.c.l.b16 %v284
        %v454 = vunpack.c.h.b16 %v284
        %v455 = vunpack.c.l.b16 %v285
        %v456 = vunpack.c.h.b16 %v285
        %v457 = vunpack.c.l.b16 %v286
        %v458 = vunpack.c.h.b16 %v286
        %v459 = vunpack.c.l.b16 %v287
        %v460 = vunpack.c.h.b16 %v287
        %v461 = vunpack.c.l.b16 %v288
        %v462 = vunpack.c.h.b16 %v288
        %v463 = vunpack.c.l.b16 %v289
        %v464 = vunpack.c.h.b16 %v289
        %v465 = vunpack.c.l.b16 %v290
        %v466 = vunpack.c.h.b16 %v290
        %v467 = vunpack.c.l.b16 %v291
        %v468 = vunpack.c.h.b16 %v291
        %v469 = vunpack.c.l.b16 %v292
        %v470 = vunpack.c.h.b16 %v292
        %v471 = vunpack.c.l.b16 %v293
        %v472 = vunpack.c.h.b16 %v293
        %v473 = vunpack.c.l.b16 %v294
        %v474 = vunpack.c.h.b16 %v294
        %v475 = vunpack.c.l.b16 %v295
        %v476 = vunpack.c.h.b16 %v295
        %v477 = vunpack.c.l.b16 %v296
        %v478 = vunpack.c.h.b16 %v296
        %v479 = vunpack.c.l.b16 %v297
        %v480 = vunpack.c.h.b16 %v297
        %v481 = vunpack.c.l.b16 %v298
        %v482 = vunpack.c.h.b16 %v298
        %v483 = vunpack.c.l.b16 %v299
        %v484 = vunpack.c.h.b16 %v299
        %v485 = vunpack.c.l.b16 %v300
        %v486 = vunpack.c.h.b16 %v300
        %v487 = vunpack.c.l.b16 %v301
        %v488 = vunpack.c.h.b16 %v301
        %v489 = vunpack.c.l.b16 %v302
        %v490 = vunpack.c.h.b16 %v302
        %v491 = vunpack.c.l.b16 %v303
        %v492 = vunpack.c.h.b16 %v303
        %v493 = vunpack.c.l.b16 %v304
        %v494 = vunpack.c.h.b16 %v304
        %v495 = vunpack.c.l.b16 %v305
        %v496 = vunpack.c.h.b16 %v305
        %v497 = vunpack.c.l.b16 %v306
        %v498 = vunpack.c.h.b16 %v306
        %v499 = vunpack.c.l.b16 %v307
        %v500 = vunpack.c.h.b16 %v307
        %v501 = vunpack.c.l.b16 %v308
        %v502 = vunpack.c.h.b16 %v308
        %v503 = vunpack.c.l.b16 %v309
        %v504 = vunpack.c.h.b16 %v309
        %v505 = vunpack.c.l.b16 %v310
        %v506 = vunpack.c.h.b16 %v310
        %v507 = vunpack.c.l.b16 %v311
        %v508 = vunpack.c.h.b16 %v311
        %v509 = vunpack.c.l.b16 %v312
        %v510 = vunpack.c.h.b16 %v312
        %v511 = vunpack.c.l.b16 %v313
        %v512 = vunpack.c.h.b16 %v313
        %v513 = vunpack.c.l.b16 %v314
        %v514 = vunpack.c.h.b16 %v314
        %v515 = vunpack.c.l.b16 %v315
        %v516 = vunpack.c.h.b16 %v315
        %v517 = vunpack.c.l.b16 %v316
        %v518 = vunpack.c.h.b16 %v316
        %v519 = vunpack.c.l.b16 %v317
        %v520 = vunpack.c.h.b16 %v317
        %v521 = vunpack.c.l.b16 %v318
        %v522 = vunpack.c.h.b16 %v318
        %v523 = vunpack.c.l.b16 %v319
        %v524 = vunpack.c.h.b16 %v319
        %v525 = vunpack.c.l.b16 %v320
        %v526 = vunpack.c.h.b16 %v320
        %v527 = vunpack.c.l.b16 %v321
        %v528 = vunpack.c.h.b16 %v321
        %v529 = vunpack.c.l.b16 %v322
        %v530 = vunpack.c.h.b16 %v322
        %v531 = vunpack.c.l.b16 %v323
        %v532 = vunpack.c.h.b16 %v323
        %v533 = vunpack.c.l.b16 %v324
        %v534 = vunpack.c.h.b16 %v324
        %v535 = vunpack.c.l.b16 %v325
        %v536 = vunpack.c.h.b16 %v325
        %v537 = vunpack.c.l.b16 %v326
        %v538 = vunpack.c.h.b16 %v326
        %v539 = vunpack.c.l.b16 %v327
        %v540 = vunpack.c.h.b16 %v327
        %v541 = vunpack.c.l.b16 %v328
        %v542 = vunpack.c.h.b16 %v328
        %v543 = vunpack.c.l.b16 %v329
        %v544 = vunpack.c.h.b16 %v329
        %v545 = vunpack.c.l.b16 %v330
        %v546 = vunpack.c.h.b16 %v330
        %v547 = vunpack.c.l.b16 %v331
        %v548 = vunpack.c.h.b16 %v331
        %v549 = vunpack.c.l.b16 %v332
        %v550 = vunpack.c.h.b16 %v332
        %v551 = vunpack.c.l.b16 %v333
        %v552 = vunpack.c.h.b16 %v333
        %v553 = vunpack.c.l.b16 %v334
        %v554 = vunpack.c.h.b16 %v334
        %v555 = vunpack.c.l.b16 %v335
        %v556 = vunpack.c.h.b16 %v335
        %v557 = vunpack.c.l.b16 %v336
        %v558 = vunpack.c.h.b16 %v336
        %v559 = vunpack.c.l.b16 %v337
        %v560 = vunpack.c.h.b16 %v337
        %v561 = vunpack.c.l.b16 %v338
        %v562 = vunpack.c.h.b16 %v338
        %v563 = vpack.c.b16 %v437, %v435
        %v564 = vpack.c.b16 %v438, %v436
        %v565 = vpack.c.b16 %v441, %v439
        %v566 = vpack.c.b16 %v442, %v440
        %v567 = vpack.c.b16 %v445, %v443
        %v568 = vpack.c.b16 %v446, %v444
        %v569 = vpack.c.b16 %v449, %v447
        %v570 = vpack.c.b16 %v450, %v448
        %v571 = vpack.c.b16 %v453, %v451
        %v572 = vpack.c.b16 %v454, %v452
        %v573 = vpack.c.b16 %v457, %v455
        %v574 = vpack.c.b16 %v458, %v456
        %v575 = vpack.c.b16 %v461, %v459
        %v576 = vpack.c.b16 %v462, %v460
        %v577 = vpack.c.b16 %v465, %v463
        %v578 = vpack.c.b16 %v466, %v464
        %v579 = vpack.c.b16 %v469, %v467
        %v580 = vpack.c.b16 %v470, %v468
        %v581 = vpack.c.b16 %v473, %v471
        %v582 = vpack.c.b16 %v474, %v472
        %v583 = vpack.c.b16 %v477, %v475
        %v584 = vpack.c.b16 %v478, %v476
        %v585 = vpack.c.b16 %v481, %v479
        %v586 = vpack.c.b16 %v482, %v480
        %v587 = vpack.c.b16 %v485, %v483
        %v588 = vpack.c.b16 %v486, %v484
        %v589 = vpack.c.b16 %v489, %v487
        %v590 = vpack.c.b16 %v490, %v488
        %v591 = vpack.c.b16 %v493, %v491
        %v592 = vpack.c.b16 %v494, %v492
        %v593 = vpack.c.b16 %v497, %v495
        %v594 = vpack.c.b16 %v498, %v496
        %v595 = vpack.c.b16 %v501, %v499
        %v596 = vpack.c.b16 %v502, %v500
        %v597 = vpack.c.b16 %v505, %v503
        %v598 = vpack.c.b16 %v506, %v504
        %v599 = vpack.c.b16 %v509, %v507
        %v600 = vpack.c.b16 %v510, %v508
        %v601 = vpack.c.b16 %v513, %v511
        %v602 = vpack.c.b16 %v514, %v512
        %v603 = vpack.c.b16 %v517, %v515
        %v604 = vpack.c.b16 %v518, %v516
        %v605 = vpack.c.b16 %v521, %v519
        %v606 = vpack.c.b16 %v522, %v520
        %v607 = vpack.c.b16 %v525, %v523
        %v608 = vpack.c.b16 %v526, %v524
        %v609 = vpack.c.b16 %v529, %v527
        %v610 = vpack.c.b16 %v530, %v528
        %v611 = vpack.c.b16 %v533, %v531
        %v612 = vpack.c.b16 %v534, %v532
        %v613 = vpack.c.b16 %v537, %v535
        %v614 = vpack.c.b16 %v538, %v536
        %v615 = vpack.c.b16 %v541, %v539
        %v616 = vpack.c.b16 %v542, %v540
        %v617 = vpack.c.b16 %v545, %v543
        %v618 = vpack.c.b16 %v546, %v544
        %v619 = vpack.c.b16 %v549, %v547
        %v620 = vpack.c.b16 %v550, %v548
        %v621 = vpack.c.b16 %v553, %v551
        %v622 = vpack.c.b16 %v554, %v552
        %v623 = vpack.c.b16 %v557, %v555
        %v624 = vpack.c.b16 %v558, %v556
        %v625 = vpack.c.b16 %v561, %v559
        %v626 = vpack.c.b16 %v562, %v560
        %691 = vmatprep.subr.bf16.mxu0 %v564
        %692 = vmatpush1.bf16.msra.mxu0 %v563
        %693 = vmatprep.subr.bf16.mxu0 %v566
        %694 = vmatpush1.bf16.msra.mxu0 %v565
        %695 = vmatprep.subr.bf16.mxu0 %v568
        %696 = vmatpush1.bf16.msra.mxu0 %v567
        %697 = vmatprep.subr.bf16.mxu0 %v570
        %698 = vmatpush1.bf16.msra.mxu0 %v569
        %699 = vmatprep.subr.bf16.mxu0 %v572
        %700 = vmatpush1.bf16.msra.mxu0 %v571
        %701 = vmatprep.subr.bf16.mxu0 %v574
        %702 = vmatpush1.bf16.msra.mxu0 %v573
        %703 = vmatprep.subr.bf16.mxu0 %v576
        %704 = vmatpush1.bf16.msra.mxu0 %v575
        %705 = vmatprep.subr.bf16.mxu0 %v578
        %706 = vmatpush1.bf16.msra.mxu0 %v577
        %707 = vmatprep.subr.bf16.mxu0 %v580
        %708 = vmatpush1.bf16.msra.mxu0 %v579
        %709 = vmatprep.subr.bf16.mxu0 %v582
        %710 = vmatpush1.bf16.msra.mxu0 %v581
        %711 = vmatprep.subr.bf16.mxu0 %v584
        %712 = vmatpush1.bf16.msra.mxu0 %v583
        %713 = vmatprep.subr.bf16.mxu0 %v586
        %714 = vmatpush1.bf16.msra.mxu0 %v585
        %715 = vmatprep.subr.bf16.mxu0 %v588
        %716 = vmatpush1.bf16.msra.mxu0 %v587
        %717 = vmatprep.subr.bf16.mxu0 %v590
        %718 = vmatpush1.bf16.msra.mxu0 %v589
        %719 = vmatprep.subr.bf16.mxu0 %v592
        %720 = vmatpush1.bf16.msra.mxu0 %v591
        %721 = vmatprep.subr.bf16.mxu0 %v594
        %722 = vmatpush1.bf16.msra.mxu0 %v593
        %723 = vmatprep.mubr.bf16.mxu0 %v364
        %724 = vmatmul.mubr.bf16.gmra.mrb[0].mxu0 %v363
        %v725 = vpop.f32.mrb[0].mxu0
        %v726 = vadd.f32 %v344, %v725
        %v727 = vpop.f32.mrb[0].mxu0
        %v728 = vadd.f32 %v348, %v727
        %v729 = vpop.f32.mrb[0].mxu0
        %v730 = vadd.f32 %v344, %v729
        %v731 = vpop.f32.mrb[0].mxu0
        %v732 = vadd.f32 %v348, %v731
        %733 = vdwg.mxu0
        %734 = vmatprep.subr.bf16.mxu0 %v596
        %735 = vmatpush1.bf16.msra.mxu0 %v595
        %736 = vmatprep.subr.bf16.mxu0 %v598
        %737 = vmatpush1.bf16.msra.mxu0 %v597
        %738 = vmatprep.subr.bf16.mxu0 %v600
        %739 = vmatpush1.bf16.msra.mxu0 %v599
        %740 = vmatprep.subr.bf16.mxu0 %v602
        %741 = vmatpush1.bf16.msra.mxu0 %v601
        %742 = vmatprep.subr.bf16.mxu0 %v604
        %743 = vmatpush1.bf16.msra.mxu0 %v603
        %744 = vmatprep.subr.bf16.mxu0 %v606
        %745 = vmatpush1.bf16.msra.mxu0 %v605
        %746 = vmatprep.subr.bf16.mxu0 %v608
        %747 = vmatpush1.bf16.msra.mxu0 %v607
        %748 = vmatprep.subr.bf16.mxu0 %v610
        %749 = vmatpush1.bf16.msra.mxu0 %v609
        %750 = vmatprep.subr.bf16.mxu0 %v612
        %751 = vmatpush1.bf16.msra.mxu0 %v611
        %752 = vmatprep.subr.bf16.mxu0 %v614
        %753 = vmatpush1.bf16.msra.mxu0 %v613
        %754 = vmatprep.subr.bf16.mxu0 %v616
        %755 = vmatpush1.bf16.msra.mxu0 %v615
        %756 = vmatprep.subr.bf16.mxu0 %v618
        %757 = vmatpush1.bf16.msra.mxu0 %v617
        %758 = vmatprep.subr.bf16.mxu0 %v620
        %759 = vmatpush1.bf16.msra.mxu0 %v619
        %760 = vmatprep.subr.bf16.mxu0 %v622
        %761 = vmatpush1.bf16.msra.mxu0 %v621
        %762 = vmatprep.subr.bf16.mxu0 %v624
        %763 = vmatpush1.bf16.msra.mxu0 %v623
        %764 = vmatprep.subr.bf16.mxu0 %v626
        %765 = vmatpush1.bf16.msra.mxu0 %v625
        %766 = vmatprep.mubr.bf16.mxu0 %v366
        %767 = vmatmul.mubr.bf16.gmra.mrb[0].mxu0 %v365
        %v768 = vpop.f32.mrb[0].mxu0
        %v769 = vadd.f32 %v726, %v768
        %v770 = vpop.f32.mrb[0].mxu0
        %v771 = vadd.f32 %v728, %v770
        %v772 = vpop.f32.mrb[0].mxu0
        %v773 = vadd.f32 %v730, %v772
        %v774 = vpop.f32.mrb[0].mxu0
        %v775 = vadd.f32 %v732, %v774
        %776 = vdwg.mxu0
        %v777 = vmax.f32 %v769, 0.0
        %v778 = vmax.f32 %v771, 0.0
        %v779 = vmax.f32 %v773, 0.0
        %v780 = vmax.f32 %v775, 0.0
        %v781 = vld [vmem:[%s3] sm:$0x3]
        %v783 = vlaneseq
        %v784 = vshrl.u32 %v783, 7
        %v785 = vsub.s32 0, %v784
        %v786 = vrot.slane %v781, %v785
        %v787 = vlaneseq
        %v788 = vshrl.u32 %v787, 7
        %v789 = vsub.s32 1, %v788
        %v790 = vrot.slane %v781, %v789
        %v793 = vmul.f32 %v777, %v786
        %v794 = vmul.f32 %v778, %v790
        %v795 = vmul.f32 %v779, %v786
        %v796 = vmul.f32 %v780, %v790
        %v797 = vadd.f32 %v793, %v794
        %798 = vadd.xlane.f32.xlu0 %v797
        %v799 = vpop.xlane.xlu0 %798
        %v800 = vadd.f32 %v795, %v796
        %801 = vadd.xlane.f32.xlu0 %v800
        %v802 = vpop.xlane.xlu0 %801
        %v803 = vadd.f32 %v799, 0.0
        %v804 = vadd.f32 %v802, 0.0
        %v805 = vld [vmem:[#allocation5 + $0x8] sm:$0xff]
        %v806 = vld [vmem:[#allocation5 + $0x18] sm:$0xff]
        %v807 = vld [vmem:[#allocation5 + $0x28] sm:$0xff]
        %v808 = vld [vmem:[#allocation5 + $0x38] sm:$0xff]
        %v809 = vld [vmem:[#allocation5 + $0x48] sm:$0xff]
        %v810 = vld [vmem:[#allocation5 + $0x58] sm:$0xff]
        %v811 = vld [vmem:[#allocation5 + $0x68] sm:$0xff]
        %v812 = vld [vmem:[#allocation5 + $0x78] sm:$0xff]
        %v813 = vld [vmem:[#allocation5 + $0x88] sm:$0xff]
        %v814 = vld [vmem:[#allocation5 + $0x98] sm:$0xff]
        %v815 = vld [vmem:[#allocation5 + $0xa8] sm:$0xff]
        %v816 = vld [vmem:[#allocation5 + $0xb8] sm:$0xff]
        %v817 = vld [vmem:[#allocation5 + $0xc8] sm:$0xff]
        %v818 = vld [vmem:[#allocation5 + $0xd8] sm:$0xff]
        %v819 = vld [vmem:[#allocation5 + $0xe8] sm:$0xff]
        %v820 = vld [vmem:[#allocation5 + $0xf8] sm:$0xff]
        %v821 = vld [vmem:[#allocation5 + $0x108] sm:$0xff]
        %v822 = vld [vmem:[#allocation5 + $0x118] sm:$0xff]
        %v823 = vld [vmem:[#allocation5 + $0x128] sm:$0xff]
        %v824 = vld [vmem:[#allocation5 + $0x138] sm:$0xff]
        %v825 = vld [vmem:[#allocation5 + $0x148] sm:$0xff]
        %v826 = vld [vmem:[#allocation5 + $0x158] sm:$0xff]
        %v827 = vld [vmem:[#allocation5 + $0x168] sm:$0xff]
        %v828 = vld [vmem:[#allocation5 + $0x178] sm:$0xff]
        %v829 = vld [vmem:[#allocation5 + $0x188] sm:$0xff]
        %v830 = vld [vmem:[#allocation5 + $0x198] sm:$0xff]
        %v831 = vld [vmem:[#allocation5 + $0x1a8] sm:$0xff]
        %v832 = vld [vmem:[#allocation5 + $0x1b8] sm:$0xff]
        %v833 = vld [vmem:[#allocation5 + $0x1c8] sm:$0xff]
        %v834 = vld [vmem:[#allocation5 + $0x1d8] sm:$0xff]
        %v835 = vld [vmem:[#allocation5 + $0x1e8] sm:$0xff]
        %v836 = vld [vmem:[#allocation5 + $0x1f8] sm:$0xff]
        %v837 = vld [vmem:[#allocation5 + $0x208] sm:$0xff]
        %v838 = vld [vmem:[#allocation5 + $0x218] sm:$0xff]
        %v839 = vld [vmem:[#allocation5 + $0x228] sm:$0xff]
        %v840 = vld [vmem:[#allocation5 + $0x238] sm:$0xff]
        %v841 = vld [vmem:[#allocation5 + $0x248] sm:$0xff]
        %v842 = vld [vmem:[#allocation5 + $0x258] sm:$0xff]
        %v843 = vld [vmem:[#allocation5 + $0x268] sm:$0xff]
        %v844 = vld [vmem:[#allocation5 + $0x278] sm:$0xff]
        %v845 = vld [vmem:[#allocation5 + $0x288] sm:$0xff]
        %v846 = vld [vmem:[#allocation5 + $0x298] sm:$0xff]
        %v847 = vld [vmem:[#allocation5 + $0x2a8] sm:$0xff]
        %v848 = vld [vmem:[#allocation5 + $0x2b8] sm:$0xff]
        %v849 = vld [vmem:[#allocation5 + $0x2c8] sm:$0xff]
        %v850 = vld [vmem:[#allocation5 + $0x2d8] sm:$0xff]
        %v851 = vld [vmem:[#allocation5 + $0x2e8] sm:$0xff]
        %v852 = vld [vmem:[#allocation5 + $0x2f8] sm:$0xff]
        %v853 = vld [vmem:[#allocation5 + $0x308] sm:$0xff]
        %v854 = vld [vmem:[#allocation5 + $0x318] sm:$0xff]
        %v855 = vld [vmem:[#allocation5 + $0x328] sm:$0xff]
        %v856 = vld [vmem:[#allocation5 + $0x338] sm:$0xff]
        %v857 = vld [vmem:[#allocation5 + $0x348] sm:$0xff]
        %v858 = vld [vmem:[#allocation5 + $0x358] sm:$0xff]
        %v859 = vld [vmem:[#allocation5 + $0x368] sm:$0xff]
        %v860 = vld [vmem:[#allocation5 + $0x378] sm:$0xff]
        %v861 = vld [vmem:[#allocation5 + $0x388] sm:$0xff]
        %v862 = vld [vmem:[#allocation5 + $0x398] sm:$0xff]
        %v863 = vld [vmem:[#allocation5 + $0x3a8] sm:$0xff]
        %v864 = vld [vmem:[#allocation5 + $0x3b8] sm:$0xff]
        %v865 = vld [vmem:[#allocation5 + $0x3c8] sm:$0xff]
        %v866 = vld [vmem:[#allocation5 + $0x3d8] sm:$0xff]
        %v867 = vld [vmem:[#allocation5 + $0x3e8] sm:$0xff]
        %v868 = vld [vmem:[#allocation5 + $0x3f8] sm:$0xff]
        %v869 = vld [vmem:[%s2 + $0x2] sm:$0x3]
        %v871 = vlaneseq
        %v872 = vshrl.u32 %v871, 7
        %v873 = vsub.s32 0, %v872
        %v874 = vrot.slane %v869, %v873
        %v875 = vlaneseq
        %v876 = vshrl.u32 %v875, 7
        %v877 = vsub.s32 1, %v876
        %v878 = vrot.slane %v869, %v877
        %v945 = vunpack.c.l.b16 %v805
        %v946 = vunpack.c.h.b16 %v805
        %v947 = vunpack.c.l.b16 %v806
        %v948 = vunpack.c.h.b16 %v806
        %v949 = vunpack.c.l.b16 %v807
        %v950 = vunpack.c.h.b16 %v807
        %v951 = vunpack.c.l.b16 %v808
        %v952 = vunpack.c.h.b16 %v808
        %v953 = vunpack.c.l.b16 %v809
        %v954 = vunpack.c.h.b16 %v809
        %v955 = vunpack.c.l.b16 %v810
        %v956 = vunpack.c.h.b16 %v810
        %v957 = vunpack.c.l.b16 %v811
        %v958 = vunpack.c.h.b16 %v811
        %v959 = vunpack.c.l.b16 %v812
        %v960 = vunpack.c.h.b16 %v812
        %v961 = vunpack.c.l.b16 %v813
        %v962 = vunpack.c.h.b16 %v813
        %v963 = vunpack.c.l.b16 %v814
        %v964 = vunpack.c.h.b16 %v814
        %v965 = vunpack.c.l.b16 %v815
        %v966 = vunpack.c.h.b16 %v815
        %v967 = vunpack.c.l.b16 %v816
        %v968 = vunpack.c.h.b16 %v816
        %v969 = vunpack.c.l.b16 %v817
        %v970 = vunpack.c.h.b16 %v817
        %v971 = vunpack.c.l.b16 %v818
        %v972 = vunpack.c.h.b16 %v818
        %v973 = vunpack.c.l.b16 %v819
        %v974 = vunpack.c.h.b16 %v819
        %v975 = vunpack.c.l.b16 %v820
        %v976 = vunpack.c.h.b16 %v820
        %v977 = vunpack.c.l.b16 %v821
        %v978 = vunpack.c.h.b16 %v821
        %v979 = vunpack.c.l.b16 %v822
        %v980 = vunpack.c.h.b16 %v822
        %v981 = vunpack.c.l.b16 %v823
        %v982 = vunpack.c.h.b16 %v823
        %v983 = vunpack.c.l.b16 %v824
        %v984 = vunpack.c.h.b16 %v824
        %v985 = vunpack.c.l.b16 %v825
        %v986 = vunpack.c.h.b16 %v825
        %v987 = vunpack.c.l.b16 %v826
        %v988 = vunpack.c.h.b16 %v826
        %v989 = vunpack.c.l.b16 %v827
        %v990 = vunpack.c.h.b16 %v827
        %v991 = vunpack.c.l.b16 %v828
        %v992 = vunpack.c.h.b16 %v828
        %v993 = vunpack.c.l.b16 %v829
        %v994 = vunpack.c.h.b16 %v829
        %v995 = vunpack.c.l.b16 %v830
        %v996 = vunpack.c.h.b16 %v830
        %v997 = vunpack.c.l.b16 %v831
        %v998 = vunpack.c.h.b16 %v831
        %v999 = vunpack.c.l.b16 %v832
        %v1000 = vunpack.c.h.b16 %v832
        %v1001 = vunpack.c.l.b16 %v833
        %v1002 = vunpack.c.h.b16 %v833
        %v1003 = vunpack.c.l.b16 %v834
        %v1004 = vunpack.c.h.b16 %v834
        %v1005 = vunpack.c.l.b16 %v835
        %v1006 = vunpack.c.h.b16 %v835
        %v1007 = vunpack.c.l.b16 %v836
        %v1008 = vunpack.c.h.b16 %v836
        %v1009 = vunpack.c.l.b16 %v837
        %v1010 = vunpack.c.h.b16 %v837
        %v1011 = vunpack.c.l.b16 %v838
        %v1012 = vunpack.c.h.b16 %v838
        %v1013 = vunpack.c.l.b16 %v839
        %v1014 = vunpack.c.h.b16 %v839
        %v1015 = vunpack.c.l.b16 %v840
        %v1016 = vunpack.c.h.b16 %v840
        %v1017 = vunpack.c.l.b16 %v841
        %v1018 = vunpack.c.h.b16 %v841
        %v1019 = vunpack.c.l.b16 %v842
        %v1020 = vunpack.c.h.b16 %v842
        %v1021 = vunpack.c.l.b16 %v843
        %v1022 = vunpack.c.h.b16 %v843
        %v1023 = vunpack.c.l.b16 %v844
        %v1024 = vunpack.c.h.b16 %v844
        %v1025 = vunpack.c.l.b16 %v845
        %v1026 = vunpack.c.h.b16 %v845
        %v1027 = vunpack.c.l.b16 %v846
        %v1028 = vunpack.c.h.b16 %v846
        %v1029 = vunpack.c.l.b16 %v847
        %v1030 = vunpack.c.h.b16 %v847
        %v1031 = vunpack.c.l.b16 %v848
        %v1032 = vunpack.c.h.b16 %v848
        %v1033 = vunpack.c.l.b16 %v849
        %v1034 = vunpack.c.h.b16 %v849
        %v1035 = vunpack.c.l.b16 %v850
        %v1036 = vunpack.c.h.b16 %v850
        %v1037 = vunpack.c.l.b16 %v851
        %v1038 = vunpack.c.h.b16 %v851
        %v1039 = vunpack.c.l.b16 %v852
        %v1040 = vunpack.c.h.b16 %v852
        %v1041 = vunpack.c.l.b16 %v853
        %v1042 = vunpack.c.h.b16 %v853
        %v1043 = vunpack.c.l.b16 %v854
        %v1044 = vunpack.c.h.b16 %v854
        %v1045 = vunpack.c.l.b16 %v855
        %v1046 = vunpack.c.h.b16 %v855
        %v1047 = vunpack.c.l.b16 %v856
        %v1048 = vunpack.c.h.b16 %v856
        %v1049 = vunpack.c.l.b16 %v857
        %v1050 = vunpack.c.h.b16 %v857
        %v1051 = vunpack.c.l.b16 %v858
        %v1052 = vunpack.c.h.b16 %v858
        %v1053 = vunpack.c.l.b16 %v859
        %v1054 = vunpack.c.h.b16 %v859
        %v1055 = vunpack.c.l.b16 %v860
        %v1056 = vunpack.c.h.b16 %v860
        %v1057 = vunpack.c.l.b16 %v861
        %v1058 = vunpack.c.h.b16 %v861
        %v1059 = vunpack.c.l.b16 %v862
        %v1060 = vunpack.c.h.b16 %v862
        %v1061 = vunpack.c.l.b16 %v863
        %v1062 = vunpack.c.h.b16 %v863
        %v1063 = vunpack.c.l.b16 %v864
        %v1064 = vunpack.c.h.b16 %v864
        %v1065 = vunpack.c.l.b16 %v865
        %v1066 = vunpack.c.h.b16 %v865
        %v1067 = vunpack.c.l.b16 %v866
        %v1068 = vunpack.c.h.b16 %v866
        %v1069 = vunpack.c.l.b16 %v867
        %v1070 = vunpack.c.h.b16 %v867
        %v1071 = vunpack.c.l.b16 %v868
        %v1072 = vunpack.c.h.b16 %v868
        %v1073 = vpack.c.b16 %v947, %v945
        %v1074 = vpack.c.b16 %v948, %v946
        %v1075 = vpack.c.b16 %v951, %v949
        %v1076 = vpack.c.b16 %v952, %v950
        %v1077 = vpack.c.b16 %v955, %v953
        %v1078 = vpack.c.b16 %v956, %v954
        %v1079 = vpack.c.b16 %v959, %v957
        %v1080 = vpack.c.b16 %v960, %v958
        %v1081 = vpack.c.b16 %v963, %v961
        %v1082 = vpack.c.b16 %v964, %v962
        %v1083 = vpack.c.b16 %v967, %v965
        %v1084 = vpack.c.b16 %v968, %v966
        %v1085 = vpack.c.b16 %v971, %v969
        %v1086 = vpack.c.b16 %v972, %v970
        %v1087 = vpack.c.b16 %v975, %v973
        %v1088 = vpack.c.b16 %v976, %v974
        %v1089 = vpack.c.b16 %v979, %v977
        %v1090 = vpack.c.b16 %v980, %v978
        %v1091 = vpack.c.b16 %v983, %v981
        %v1092 = vpack.c.b16 %v984, %v982
        %v1093 = vpack.c.b16 %v987, %v985
        %v1094 = vpack.c.b16 %v988, %v986
        %v1095 = vpack.c.b16 %v991, %v989
        %v1096 = vpack.c.b16 %v992, %v990
        %v1097 = vpack.c.b16 %v995, %v993
        %v1098 = vpack.c.b16 %v996, %v994
        %v1099 = vpack.c.b16 %v999, %v997
        %v1100 = vpack.c.b16 %v1000, %v998
        %v1101 = vpack.c.b16 %v1003, %v1001
        %v1102 = vpack.c.b16 %v1004, %v1002
        %v1103 = vpack.c.b16 %v1007, %v1005
        %v1104 = vpack.c.b16 %v1008, %v1006
        %v1105 = vpack.c.b16 %v1011, %v1009
        %v1106 = vpack.c.b16 %v1012, %v1010
        %v1107 = vpack.c.b16 %v1015, %v1013
        %v1108 = vpack.c.b16 %v1016, %v1014
        %v1109 = vpack.c.b16 %v1019, %v1017
        %v1110 = vpack.c.b16 %v1020, %v1018
        %v1111 = vpack.c.b16 %v1023, %v1021
        %v1112 = vpack.c.b16 %v1024, %v1022
        %v1113 = vpack.c.b16 %v1027, %v1025
        %v1114 = vpack.c.b16 %v1028, %v1026
        %v1115 = vpack.c.b16 %v1031, %v1029
        %v1116 = vpack.c.b16 %v1032, %v1030
        %v1117 = vpack.c.b16 %v1035, %v1033
        %v1118 = vpack.c.b16 %v1036, %v1034
        %v1119 = vpack.c.b16 %v1039, %v1037
        %v1120 = vpack.c.b16 %v1040, %v1038
        %v1121 = vpack.c.b16 %v1043, %v1041
        %v1122 = vpack.c.b16 %v1044, %v1042
        %v1123 = vpack.c.b16 %v1047, %v1045
        %v1124 = vpack.c.b16 %v1048, %v1046
        %v1125 = vpack.c.b16 %v1051, %v1049
        %v1126 = vpack.c.b16 %v1052, %v1050
        %v1127 = vpack.c.b16 %v1055, %v1053
        %v1128 = vpack.c.b16 %v1056, %v1054
        %v1129 = vpack.c.b16 %v1059, %v1057
        %v1130 = vpack.c.b16 %v1060, %v1058
        %v1131 = vpack.c.b16 %v1063, %v1061
        %v1132 = vpack.c.b16 %v1064, %v1062
        %v1133 = vpack.c.b16 %v1067, %v1065
        %v1134 = vpack.c.b16 %v1068, %v1066
        %v1135 = vpack.c.b16 %v1071, %v1069
        %v1136 = vpack.c.b16 %v1072, %v1070
        %1201 = vmatprep.subr.bf16.mxu0 %v1074
        %1202 = vmatpush1.bf16.msra.mxu0 %v1073
        %1203 = vmatprep.subr.bf16.mxu0 %v1076
        %1204 = vmatpush1.bf16.msra.mxu0 %v1075
        %1205 = vmatprep.subr.bf16.mxu0 %v1078
        %1206 = vmatpush1.bf16.msra.mxu0 %v1077
        %1207 = vmatprep.subr.bf16.mxu0 %v1080
        %1208 = vmatpush1.bf16.msra.mxu0 %v1079
        %1209 = vmatprep.subr.bf16.mxu0 %v1082
        %1210 = vmatpush1.bf16.msra.mxu0 %v1081
        %1211 = vmatprep.subr.bf16.mxu0 %v1084
        %1212 = vmatpush1.bf16.msra.mxu0 %v1083
        %1213 = vmatprep.subr.bf16.mxu0 %v1086
        %1214 = vmatpush1.bf16.msra.mxu0 %v1085
        %1215 = vmatprep.subr.bf16.mxu0 %v1088
        %1216 = vmatpush1.bf16.msra.mxu0 %v1087
        %1217 = vmatprep.subr.bf16.mxu0 %v1090
        %1218 = vmatpush1.bf16.msra.mxu0 %v1089
        %1219 = vmatprep.subr.bf16.mxu0 %v1092
        %1220 = vmatpush1.bf16.msra.mxu0 %v1091
        %1221 = vmatprep.subr.bf16.mxu0 %v1094
        %1222 = vmatpush1.bf16.msra.mxu0 %v1093
        %1223 = vmatprep.subr.bf16.mxu0 %v1096
        %1224 = vmatpush1.bf16.msra.mxu0 %v1095
        %1225 = vmatprep.subr.bf16.mxu0 %v1098
        %1226 = vmatpush1.bf16.msra.mxu0 %v1097
        %1227 = vmatprep.subr.bf16.mxu0 %v1100
        %1228 = vmatpush1.bf16.msra.mxu0 %v1099
        %1229 = vmatprep.subr.bf16.mxu0 %v1102
        %1230 = vmatpush1.bf16.msra.mxu0 %v1101
        %1231 = vmatprep.subr.bf16.mxu0 %v1104
        %1232 = vmatpush1.bf16.msra.mxu0 %v1103
        %1233 = vmatprep.mubr.bf16.mxu0 %v364
        %1234 = vmatmul.mubr.bf16.gmra.mrb[0].mxu0 %v363
        %v1235 = vpop.f32.mrb[0].mxu0
        %v1236 = vadd.f32 %v874, %v1235
        %v1237 = vpop.f32.mrb[0].mxu0
        %v1238 = vadd.f32 %v878, %v1237
        %v1239 = vpop.f32.mrb[0].mxu0
        %v1240 = vadd.f32 %v874, %v1239
        %v1241 = vpop.f32.mrb[0].mxu0
        %v1242 = vadd.f32 %v878, %v1241
        %1243 = vdwg.mxu0
        %1244 = vmatprep.subr.bf16.mxu0 %v1106
        %1245 = vmatpush1.bf16.msra.mxu0 %v1105
        %1246 = vmatprep.subr.bf16.mxu0 %v1108
        %1247 = vmatpush1.bf16.msra.mxu0 %v1107
        %1248 = vmatprep.subr.bf16.mxu0 %v1110
        %1249 = vmatpush1.bf16.msra.mxu0 %v1109
        %1250 = vmatprep.subr.bf16.mxu0 %v1112
        %1251 = vmatpush1.bf16.msra.mxu0 %v1111
        %1252 = vmatprep.subr.bf16.mxu0 %v1114
        %1253 = vmatpush1.bf16.msra.mxu0 %v1113
        %1254 = vmatprep.subr.bf16.mxu0 %v1116
        %1255 = vmatpush1.bf16.msra.mxu0 %v1115
        %1256 = vmatprep.subr.bf16.mxu0 %v1118
        %1257 = vmatpush1.bf16.msra.mxu0 %v1117
        %1258 = vmatprep.subr.bf16.mxu0 %v1120
        %1259 = vmatpush1.bf16.msra.mxu0 %v1119
        %1260 = vmatprep.subr.bf16.mxu0 %v1122
        %1261 = vmatpush1.bf16.msra.mxu0 %v1121
        %1262 = vmatprep.subr.bf16.mxu0 %v1124
        %1263 = vmatpush1.bf16.msra.mxu0 %v1123
        %1264 = vmatprep.subr.bf16.mxu0 %v1126
        %1265 = vmatpush1.bf16.msra.mxu0 %v1125
        %1266 = vmatprep.subr.bf16.mxu0 %v1128
        %1267 = vmatpush1.bf16.msra.mxu0 %v1127
        %1268 = vmatprep.subr.bf16.mxu0 %v1130
        %1269 = vmatpush1.bf16.msra.mxu0 %v1129
        %1270 = vmatprep.subr.bf16.mxu0 %v1132
        %1271 = vmatpush1.bf16.msra.mxu0 %v1131
        %1272 = vmatprep.subr.bf16.mxu0 %v1134
        %1273 = vmatpush1.bf16.msra.mxu0 %v1133
        %1274 = vmatprep.subr.bf16.mxu0 %v1136
        %1275 = vmatpush1.bf16.msra.mxu0 %v1135
        %1276 = vmatprep.mubr.bf16.mxu0 %v366
        %1277 = vmatmul.mubr.bf16.gmra.mrb[0].mxu0 %v365
        %v1278 = vpop.f32.mrb[0].mxu0
        %v1279 = vadd.f32 %v1236, %v1278
        %v1280 = vpop.f32.mrb[0].mxu0
        %v1281 = vadd.f32 %v1238, %v1280
        %v1282 = vpop.f32.mrb[0].mxu0
        %v1283 = vadd.f32 %v1240, %v1282
        %v1284 = vpop.f32.mrb[0].mxu0
        %v1285 = vadd.f32 %v1242, %v1284
        %1286 = vdwg.mxu0
        %v1287 = vmax.f32 %v1279, 0.0
        %v1288 = vmax.f32 %v1281, 0.0
        %v1289 = vmax.f32 %v1283, 0.0
        %v1290 = vmax.f32 %v1285, 0.0
        %v1291 = vld [vmem:[%s3 + $0x2] sm:$0x3]
        %v1293 = vlaneseq
        %v1294 = vshrl.u32 %v1293, 7
        %v1295 = vsub.s32 0, %v1294
        %v1296 = vrot.slane %v1291, %v1295
        %v1297 = vlaneseq
        %v1298 = vshrl.u32 %v1297, 7
        %v1299 = vsub.s32 1, %v1298
        %v1300 = vrot.slane %v1291, %v1299
        %v1303 = vmul.f32 %v1287, %v1296
        %v1304 = vmul.f32 %v1288, %v1300
        %v1305 = vmul.f32 %v1289, %v1296
        %v1306 = vmul.f32 %v1290, %v1300
        %v1307 = vadd.f32 %v1303, %v1304
        %1308 = vadd.xlane.f32.xlu0 %v1307
        %v1309 = vpop.xlane.xlu0 %1308
        %v1310 = vadd.f32 %v1305, %v1306
        %1311 = vadd.xlane.f32.xlu0 %v1310
        %v1312 = vpop.xlane.xlu0 %1311
        %v1313 = vadd.f32 %v803, %v1309
        %v1314 = vadd.f32 %v804, %v1312
        %s1315 = sld [smem:[#allocation2]]
        %v1316 = vstv %s1315
        %v1317 = vadd.f32 %v1313, %v1316
        %v1318 = vadd.f32 %v1314, %v1316
        %v1319 = vxor.u32 %v1317, 2147483648
        %v1320 = vxor.u32 %v1318, 2147483648
        %v1321 = vmul.f32 %v1319, 1.442695
        %v1322 = vpow.pop %v1321
        %v1323 = vmul.f32 %v1320, 1.442695
        %v1324 = vpow.pop %v1323
        %v1325 = vadd.f32 %v1322, 1.0
        %v1326 = vadd.f32 %v1324, 1.0
        %v1327 = vrcp.pop %v1325
        %v1328 = vmul.f32 1.0, %v1327
        %v1329 = vrcp.pop %v1326
        %v1330 = vmul.f32 1.0, %v1329
        %v1333 = vlaneseq
        %v1334 = vand.u32 %v1333, 127
        %v1335 = vlaneseq
        %v1336 = vshrl.u32 %v1335, 7
        %v1337 = vsub.s32 %v1334, %v1336
        %v1338 = vrot.slane %v1328, %v1337
        %v1339 = vadd.s32 %v1334, 4294967288
        %v1340 = vlaneseq
        %v1341 = vshrl.u32 %v1340, 7
        %v1342 = vsub.s32 %v1339, %v1341
        %v1343 = vrot.slane %v1330, %v1342
        %vm1344 = vcmask 130112
        %v1345 = vsel %vm1344, %v1343, %v1338
        %vm1347 = vcmask 122880
        %1348 = vst.msk [vmem:[%s270] sm:$0x1] %vm1347, %v1345
        %p1349 = scmp.lt.s32.totalorder %s21, 6
        %s1350 = scalar_select %p1349, %s21, 6
        %s1351 = scalar_lea.vmem %s5, %s1350
        // Predicated region
        $region49: #{mlp_forward.1} parent=39 // pred_check
          %p1352 = pneg %p149
        $region50: #{mlp_forward.1} parent=39 // pred_check_branch
          %1354 = sbr.rel (%p1352) target = $region52
        $region51: #{mlp_forward.1} parent=39 // pred_region
          _
        $region52: #{mlp_forward.1} parent=39 // pred_fallthru
          _
      $region40: #{mlp_forward.1} parent=5 // pred_fallthru
        _
      %p1355 = scmp.le.s32.totalorder 2, %s16
      // Predicated region
      $region53: #{mlp_forward.1} parent=5 // pred_check
        %p1356 = pneg %p1355
      $region54: #{mlp_forward.1} parent=5 // pred_check_branch
        %1358 = sbr.rel (%p1356) target = $region56
      $region55: #{mlp_forward.1} parent=5 // pred_region
        %s1359 = ssub.s32 %s16, 2
        // Predicated region
        $region57: #{mlp_forward.1} parent=55 // pred_check
          %p1360 = pneg %p155
        $region58: #{mlp_forward.1} parent=55 // pred_check_branch
          %1362 = sbr.rel (%p1360) target = $region60
        $region59: #{mlp_forward.1} parent=55 // pred_region
          %p1363 = scmp.lt.s32.totalorder %s22, 6
          %s1364 = scalar_select %p1363, %s22, 6
          %s1365 = scalar_lea.vmem %s5, %s1364
        $region60: #{mlp_forward.1} parent=55 // pred_fallthru
          _
      $region56: #{mlp_forward.1} parent=5 // pred_fallthru
        _
    $region6: #{mlp_forward.1} parent=1 // loop_footer
      %s20 = sadd.s32 1, %s16
    $region7: #{mlp_forward.1} parent=1 // loop_footer_branch
      %15 = sbr.rel target = $region3
    $region8: #{mlp_forward.1} parent=1 // loop_exit
      _
    %1366 = vsyncpa [#allocation4], 1
    %s1367 = scalar_lea.sflag [#allocation4], 1
    %1368 = vsyncpa %s1367, 1
    %1369 = vsyncpa [#allocation6], 1

</llo_original>
